<compile_context>
chip_gen: v5e
topology: v5e:2x2
jax: 0.10.0
libtpu: 0.0.40
codegen_flags: <defaults>
</compile_context>

<pallas_src>
import math
import functools

import jax
import jax.numpy as jnp
from jax import lax
from jax.experimental import pallas as pl
from jax.experimental.pallas import tpu as pltpu


# ------------------------------ tiling helper ------------------------------

def _pick_tile(dim, target):
    """Largest MXU-friendly tile <= target that evenly divides dim.

    Falls back to the full dimension (full-extent blocks always satisfy the
    (8,128) block-shape rule), which is what happens for the small demo shapes.
    """
    if dim <= target:
        return dim
    for cand in (target, 512, 384, 256, 128):
        if cand <= target and dim % cand == 0:
            return cand
    return dim


# --------------------------- tiled linear kernel ---------------------------

def _matmul_bias_kernel(x_ref, w_ref, b_ref, o_ref, acc_ref):
    @pl.when(pl.program_id(2) == 0)
    def _init():
        acc_ref[...] = jnp.zeros_like(acc_ref)

    # bf16 x bf16 -> f32 accumulate on the MXU.
    acc_ref[...] += jnp.dot(x_ref[...], w_ref[...],
                            preferred_element_type=jnp.float32)

    @pl.when(pl.program_id(2) == pl.num_programs(2) - 1)
    def _done():
        o_ref[...] = (acc_ref[...] + b_ref[...]).astype(o_ref.dtype)


def pallas_linear(x2d, w, b, *, out_dtype=jnp.float32,
                  tm_target=256, tn_target=256, tk_target=512):
    """y = x2d @ w + b.  x2d: (M, K), w: (K, N), b: (N,)."""
    M, K = x2d.shape
    K2, N = w.shape
    assert K == K2
    tm = _pick_tile(M, tm_target)
    tn = _pick_tile(N, tn_target)
    tk = _pick_tile(K, tk_target)
    grid = (M // tm, N // tn, K // tk)
    return pl.pallas_call(
        _matmul_bias_kernel,
        out_shape=jax.ShapeDtypeStruct((M, N), out_dtype),
        grid=grid,
        in_specs=[
            pl.BlockSpec((tm, tk), lambda i, j, k: (i, k)),
            pl.BlockSpec((tk, tn), lambda i, j, k: (k, j)),
            pl.BlockSpec((1, tn), lambda i, j, k: (0, j)),
        ],
        out_specs=pl.BlockSpec((tm, tn), lambda i, j, k: (i, j)),
        scratch_shapes=[pltpu.VMEM((tm, tn), jnp.float32)],
        compiler_params=pltpu.CompilerParams(
            dimension_semantics=("parallel", "parallel", "arbitrary")),
    )(x2d.astype(jnp.bfloat16), w.astype(jnp.bfloat16),
      b.reshape(1, N).astype(jnp.float32))


# ------------------------ tiled causal flash attention ---------------------

def _flash_attn_kernel(q_ref, k_ref, v_ref, o_ref,
                       qs_ref, m_ref, l_ref, acc_ref,
                       *, scale, block_q, block_kv):
    qi = pl.program_id(2)
    kv = pl.program_id(3)

    @pl.when(kv == 0)
    def _init():
        # Softmax scale is folded once per q block into the small (tq, D)
        # bf16 q tile held in VMEM scratch (loop-invariant across kv steps).
        qs_ref[...] = (q_ref[0, 0].astype(jnp.float32) * scale).astype(qs_ref.dtype)
        m_ref[...] = jnp.full_like(m_ref, -jnp.inf)
        l_ref[...] = jnp.zeros_like(l_ref)
        acc_ref[...] = jnp.zeros_like(acc_ref)

    q_start = qi * block_q
    kv_start = kv * block_kv
    q_last = q_start + (block_q - 1)
    kv_last = kv_start + (block_kv - 1)

    def _step(apply_mask):
        q = qs_ref[...]
        k = k_ref[0, 0]
        v = v_ref[0, 0]
        # Contract on the last dims: MXU consumes K directly, no k.T copy.
        s = lax.dot_general(q, k, (((1,), (1,)), ((), ())),
                            preferred_element_type=jnp.float32)   # (tq, tkv)
        if apply_mask:  # only diagonal-crossing blocks pay for the iota mask
            row = q_start + lax.broadcasted_iota(jnp.int32, s.shape, 0)
            col = kv_start + lax.broadcasted_iota(jnp.int32, s.shape, 1)
            s = jnp.where(col <= row, s, -1e30)
        m_prev = m_ref[...]
        m_new = jnp.maximum(m_prev, jnp.max(s, axis=-1, keepdims=True))
        alpha = jnp.exp(m_prev - m_new)
        p = jnp.exp(s - m_new)
        l_ref[...] = alpha * l_ref[...] + jnp.sum(p, axis=-1, keepdims=True)
        acc_ref[...] = alpha * acc_ref[...] + jnp.dot(
            p.astype(v.dtype), v, preferred_element_type=jnp.float32)
        m_ref[...] = m_new

    # Causal block classification.
    fully_unmasked = kv_last <= q_start                       # below diagonal
    on_diagonal = jnp.logical_and(kv_start <= q_last, kv_last > q_start)
    # KV blocks strictly above the diagonal (kv_start > q_last) do no compute
    # and (thanks to the clamped index_map) no DMA either.

    @pl.when(fully_unmasked)
    def _no_mask():
        _step(apply_mask=False)

    @pl.when(on_diagonal)
    def _masked():
        _step(apply_mask=True)

    @pl.when(kv == pl.num_programs(3) - 1)
    def _finalize():
        o_ref[0, 0] = (acc_ref[...] *
                       pl.reciprocal(l_ref[...], approx=True)).astype(o_ref.dtype)


def pallas_causal_flash_attention(q, k, v, scale, *, t_target=256):
    """Causal online-softmax attention; q/k/v: (B, NH, S, HD) bf16 -> same."""
    B, H, S, D = q.shape
    # Same tile for q and kv so the causal diagonal block of q-block qi is
    # exactly kv-block qi (used by the DMA-skipping clamp below).
    t = _pick_tile(S, t_target)
    grid = (B, H, S // t, S // t)
    kernel = functools.partial(_flash_attn_kernel, scale=scale,
                               block_q=t, block_kv=t)
    q_spec = pl.BlockSpec((1, 1, t, D), lambda b, h, qi, kv: (b, h, qi, 0))
    # Above-diagonal kv blocks are never computed; clamp their block index to
    # the diagonal so consecutive iterations reference the same block and
    # Pallas skips the HBM->VMEM copies for them.
    kv_spec = pl.BlockSpec(
        (1, 1, t, D), lambda b, h, qi, kv: (b, h, jnp.minimum(kv, qi), 0))
    return pl.pallas_call(
        kernel,
        out_shape=jax.ShapeDtypeStruct((B, H, S, D), q.dtype),
        grid=grid,
        in_specs=[q_spec, kv_spec, kv_spec],
        out_specs=q_spec,
        scratch_shapes=[
            pltpu.VMEM((t, D), q.dtype),        # scaled q tile (bf16)
            pltpu.VMEM((t, 1), jnp.float32),    # running max m
            pltpu.VMEM((t, 1), jnp.float32),    # running denom l
            pltpu.VMEM((t, D), jnp.float32),    # output accumulator
        ],
        compiler_params=pltpu.CompilerParams(
            dimension_semantics=("parallel", "parallel", "parallel",
                                 "arbitrary")),
    )(q, k, v)


# ------------------------------ JAX glue ----------------------------------

def rotary_cos_sin(seq_len, rot_dims, base=10000.0):
    inv_freq = 1.0 / (base ** (jnp.arange(0, rot_dims, 2, dtype=jnp.float32)
                               / rot_dims))
    t = jnp.arange(seq_len, dtype=jnp.float32)
    freqs = jnp.einsum("i,j->ij", t, inv_freq)            # (S, rot/2)
    emb = jnp.concatenate([freqs, freqs], axis=-1)        # (S, rot)
    return jnp.cos(emb), jnp.sin(emb)


def _rotate_half(x):
    half = x.shape[-1] // 2
    return jnp.concatenate([-x[..., half:], x[..., :half]], axis=-1)


def apply_rotary_pos_emb(q_rot, k_rot, cos, sin):
    # position_ids=None -> positions are arange(seq_len); broadcast over (B,NH).
    cos = cos[None, None]
    sin = sin[None, None]
    q_emb = q_rot * cos + _rotate_half(q_rot) * sin
    k_emb = k_rot * cos + _rotate_half(k_rot) * sin
    return q_emb, k_emb


def flash_attention_with_rotary_forward(hidden_states, params, *,
                                        num_heads, head_size, rotary_ndims):
    B, S, HID = hidden_states.shape
    assert HID == num_heads * head_size

    # qkv = query_key_value(hidden_states) : Linear(HID -> 3*HID); emitted in
    # bf16 since the reference immediately casts to half for flash attention.
    x2d = hidden_states.reshape(B * S, HID)
    qkv = pallas_linear(x2d, params["w_qkv"], params["b_qkv"],
                        out_dtype=jnp.bfloat16)           # (B*S, 3*HID) bf16
    qkv = qkv.reshape(B, S, num_heads, 3 * head_size)

    # TODO(synk): head slicing / transpose / rotary could be fused into the
    # attention kernel's index_map to drop these HBM passes entirely (blocked
    # at demo shapes by the (8,128) block-shape rule on the tiny head dim).
    query = jnp.transpose(qkv[..., :head_size], (0, 2, 1, 3))               # (B,NH,S,HD)
    key = jnp.transpose(qkv[..., head_size:2 * head_size], (0, 2, 1, 3))    # (B,NH,S,HD)
    value = jnp.transpose(qkv[..., 2 * head_size:], (0, 2, 1, 3))           # (B,NH,S,HD)

    # rotary split / apply / concat (layer_past is None -> offset 0)
    q_rot, q_pass = query[..., :rotary_ndims], query[..., rotary_ndims:]
    k_rot, k_pass = key[..., :rotary_ndims], key[..., rotary_ndims:]
    cos, sin = rotary_cos_sin(S, rotary_ndims)
    q_rot, k_rot = apply_rotary_pos_emb(q_rot.astype(jnp.float32),
                                        k_rot.astype(jnp.float32), cos, sin)
    query = jnp.concatenate([q_rot.astype(jnp.bfloat16), q_pass], axis=-1)
    key = jnp.concatenate([k_rot.astype(jnp.bfloat16), k_pass], axis=-1)

    # FlashSelfAttention(causal=True, softmax_scale=1/sqrt(head_size)).
    scale = 1.0 / math.sqrt(head_size)
    attn = pallas_causal_flash_attention(query, key, value, scale)  # bf16

    # view to (B, S, NH*HD) then output dense projection (bf16 in, f32 out).
    attn2d = jnp.transpose(attn, (0, 2, 1, 3)).reshape(B * S,
                                                       num_heads * head_size)
    out = pallas_linear(attn2d, params["w_dense"], params["b_dense"],
                        out_dtype=jnp.float32)
    out = out.reshape(B, S, HID)

    present = None  # use_cache=False
    return out, present


# --------------------------- pure-JAX reference ----------------------------

def reference_forward(hidden_states, params, *, num_heads, head_size,
                      rotary_ndims):
    B, S, HID = hidden_states.shape
    qkv = hidden_states.reshape(B * S, HID) @ params["w_qkv"] + params["b_qkv"]
    qkv = qkv.reshape(B, S, num_heads, 3 * head_size)
    q = jnp.transpose(qkv[..., :head_size], (0, 2, 1, 3))
    k = jnp.transpose(qkv[..., head_size:2 * head_size], (0, 2, 1, 3))
    v = jnp.transpose(qkv[..., 2 * head_size:], (0, 2, 1, 3))
    q_rot, q_pass = q[..., :rotary_ndims], q[..., rotary_ndims:]
    k_rot, k_pass = k[..., :rotary_ndims], k[..., rotary_ndims:]
    cos, sin = rotary_cos_sin(S, rotary_ndims)
    q_rot, k_rot = apply_rotary_pos_emb(q_rot, k_rot, cos, sin)
    q = jnp.concatenate([q_rot, q_pass], axis=-1)
    k = jnp.concatenate([k_rot, k_pass], axis=-1)
    scale = 1.0 / math.sqrt(head_size)
    s = jnp.einsum("bhqd,bhkd->bhqk", q, k) * scale
    mask = jnp.tril(jnp.ones((S, S), bool))
    s = jnp.where(mask[None, None], s, -1e30)
    p = jax.nn.softmax(s, axis=-1)
    attn = jnp.einsum("bhqk,bhkd->bhqd", p, v)
    attn2d = jnp.transpose(attn, (0, 2, 1, 3)).reshape(B * S, HID)
    out = attn2d @ params["w_dense"] + params["b_dense"]
    return out.reshape(B, S, HID)


def init_params(key, hidden_size):
    k1, k2, k3, k4 = jax.random.split(key, 4)
    scale = 0.02
    return {
        "w_qkv": scale * jax.random.normal(k1, (hidden_size, 3 * hidden_size),
                                           jnp.float32),
        "b_qkv": scale * jax.random.normal(k2, (3 * hidden_size,), jnp.float32),
        "w_dense": scale * jax.random.normal(k3, (hidden_size, hidden_size),
                                             jnp.float32),
        "b_dense": scale * jax.random.normal(k4, (hidden_size,), jnp.float32),
    }


if __name__ == "__main__":
    B, S = 2, 8
    num_heads, head_size = 4, 8
    hidden_size = num_heads * head_size        # 32
    rotary_ndims = head_size // 2              # rotary_pct = 0.5 -> 4

    key = jax.random.PRNGKey(0)
    k_x, k_p = jax.random.split(key)
    hidden_states = jax.random.normal(k_x, (B, S, hidden_size), jnp.float32)
    attention_mask = jnp.ones((B, S), jnp.float32)   # unused (flash path ignores it)
    params = init_params(k_p, hidden_size)

    fwd = jax.jit(functools.partial(
        flash_attention_with_rotary_forward,
        num_heads=num_heads, head_size=head_size, rotary_ndims=rotary_ndims))

    attn_output, present = fwd(hidden_states, params)
    jax.block_until_ready(attn_output)
    assert attn_output.shape == (B, S, hidden_size)
    assert present is None
    assert bool(jnp.all(jnp.isfinite(attn_output)))

    # Cross-check against a pure-JAX f32 reference (loose tolerance: kernel
    # runs activations in bf16, matching the reference module's .half()).
    ref = reference_forward(hidden_states, params, num_heads=num_heads,
                            head_size=head_size, rotary_ndims=rotary_ndims)
    assert bool(jnp.allclose(attn_output, ref, atol=2e-2, rtol=2e-1)), (
        float(jnp.max(jnp.abs(attn_output - ref))))
    # TODO(synk): layer_past / use_cache KV-concat path not exercised (None here),
    # matching the default forward call; attention_mask is ignored like the
    # reference flash path.
    print("KERNEL_OK")
</pallas_src>

<mosaic_0001>
module attributes {stable_mosaic.version = 11 : i64} {
  func.func @_matmul_bias_kernel(%arg0: i32, %arg1: i32, %arg2: i32, %arg3: memref<16x32xbf16, #tpu.memory_space<vmem>>, %arg4: memref<32x96xbf16, #tpu.memory_space<vmem>>, %arg5: memref<1x96xf32, #tpu.memory_space<vmem>>, %arg6: memref<16x96xbf16, #tpu.memory_space<vmem>>, %arg7: memref<16x96xf32, #tpu.memory_space<vmem>>) attributes {dimension_semantics = [#tpu.dimension_semantics<parallel>, #tpu.dimension_semantics<parallel>, #tpu.dimension_semantics<arbitrary>], iteration_bounds = array<i64: 1, 1, 1>, scalar_prefetch = 0 : i64, scratch_operands = 1 : i64, tpu.core_type = #tpu.core_type<tc>, window_params = [{transform_indices = @transform_0, window_bounds = array<i64: 16, 32>}, {transform_indices = @transform_1, window_bounds = array<i64: 32, 96>}, {transform_indices = @transform_2, window_bounds = array<i64: 1, 96>}, {transform_indices = @transform_3, window_bounds = array<i64: 16, 96>}]} {
    %c0_i32 = arith.constant 0 : i32
    %0 = arith.cmpi eq, %arg2, %c0_i32 : i32
    %1 = arith.extui %0 : i1 to i32
    %c0_i32_0 = arith.constant 0 : i32
    %2 = arith.cmpi ne, %1, %c0_i32_0 : i32
    scf.if %2 {
      %cst_10 = arith.constant 0.000000e+00 : f32
      %12 = vector.broadcast %cst_10 : f32 to vector<16x96xf32>
      %c0_11 = arith.constant 0 : index
      %c0_12 = arith.constant 0 : index
      %13 = vector.load %arg7[%c0_11, %c0_12] : memref<16x96xf32, #tpu.memory_space<vmem>>, vector<16x96xf32>
      tpu.vector_store %arg7[%c0_11, %c0_12], %12 {strides = array<i32>} : memref<16x96xf32, #tpu.memory_space<vmem>>, vector<16x96xf32>,
    } else {
    }
    %c0 = arith.constant 0 : index
    %c0_1 = arith.constant 0 : index
    %3 = vector.load %arg7[%c0, %c0_1] : memref<16x96xf32, #tpu.memory_space<vmem>>, vector<16x96xf32>
    %c0_2 = arith.constant 0 : index
    %c0_3 = arith.constant 0 : index
    %4 = vector.load %arg3[%c0_2, %c0_3] : memref<16x32xbf16, #tpu.memory_space<vmem>>, vector<16x32xbf16>
    %c0_4 = arith.constant 0 : index
    %c0_5 = arith.constant 0 : index
    %5 = vector.load %arg4[%c0_4, %c0_5] : memref<32x96xbf16, #tpu.memory_space<vmem>>, vector<32x96xbf16>
    %cst = arith.constant dense<0.000000e+00> : vector<16x96xf32>
    %6 = tpu.matmul %4, %5, %cst {dimension_numbers = #tpu.dot_dimension_numbers<[1], [0], [0], [1], [0, 0, 1, 1], [], []>} : vector<16x32xbf16>, vector<32x96xbf16>, vector<16x96xf32> -> vector<16x96xf32>
    %7 = arith.addf %3, %6 : vector<16x96xf32>
    %c0_6 = arith.constant 0 : index
    %c0_7 = arith.constant 0 : index
    %8 = vector.load %arg7[%c0_6, %c0_7] : memref<16x96xf32, #tpu.memory_space<vmem>>, vector<16x96xf32>
    tpu.vector_store %arg7[%c0_6, %c0_7], %7 {strides = array<i32>} : memref<16x96xf32, #tpu.memory_space<vmem>>, vector<16x96xf32>,
    %c0_i32_8 = arith.constant 0 : i32
    %9 = arith.cmpi eq, %arg2, %c0_i32_8 : i32
    %10 = arith.extui %9 : i1 to i32
    %c0_i32_9 = arith.constant 0 : i32
    %11 = arith.cmpi ne, %10, %c0_i32_9 : i32
    scf.if %11 {
      %c0_10 = arith.constant 0 : index
      %c0_11 = arith.constant 0 : index
      %12 = vector.load %arg7[%c0_10, %c0_11] : memref<16x96xf32, #tpu.memory_space<vmem>>, vector<16x96xf32>
      %c0_12 = arith.constant 0 : index
      %c0_13 = arith.constant 0 : index
      %13 = vector.load %arg5[%c0_12, %c0_13] : memref<1x96xf32, #tpu.memory_space<vmem>>, vector<1x96xf32>
      %14 = vector.broadcast %13 : vector<1x96xf32> to vector<16x96xf32>
      %15 = arith.addf %12, %14 : vector<16x96xf32>
      %16 = arith.truncf %15 : vector<16x96xf32> to vector<16x96xbf16>
      %c0_14 = arith.constant 0 : index
      %c0_15 = arith.constant 0 : index
      %17 = vector.load %arg6[%c0_14, %c0_15] : memref<16x96xbf16, #tpu.memory_space<vmem>>, vector<16x96xbf16>
      tpu.vector_store %arg6[%c0_14, %c0_15], %16 {strides = array<i32>} : memref<16x96xbf16, #tpu.memory_space<vmem>>, vector<16x96xbf16>,
    } else {
    }
    return
  }
  func.func @transform_0(%arg0: i32, %arg1: i32, %arg2: i32) -> (i32, i32) {
    %c0_i32 = arith.constant 0 : i32
    return %arg0, %arg2 : i32, i32
  }
  func.func @transform_1(%arg0: i32, %arg1: i32, %arg2: i32) -> (i32, i32) {
    %c0_i32 = arith.constant 0 : i32
    return %arg2, %arg1 : i32, i32
  }
  func.func @transform_2(%arg0: i32, %arg1: i32, %arg2: i32) -> (i32, i32) {
    %c0_i32 = arith.constant 0 : i32
    %c0_i32_0 = arith.constant 0 : i32
    return %c0_i32, %arg1 : i32, i32
  }
  func.func @transform_3(%arg0: i32, %arg1: i32, %arg2: i32) -> (i32, i32) {
    %c0_i32 = arith.constant 0 : i32
    return %arg0, %arg1 : i32, i32
  }
}

module attributes {stable_mosaic.version = 11 : i64} {
  func.func @_flash_attn_kernel(%arg0: i32, %arg1: i32, %arg2: i32, %arg3: i32, %arg4: memref<1x1x8x8xbf16, #tpu.memory_space<vmem>>, %arg5: memref<1x1x8x8xbf16, #tpu.memory_space<vmem>>, %arg6: memref<1x1x8x8xbf16, #tpu.memory_space<vmem>>, %arg7: memref<1x1x8x8xbf16, #tpu.memory_space<vmem>>, %arg8: memref<8x8xbf16, #tpu.memory_space<vmem>>, %arg9: memref<8x1xf32, #tpu.memory_space<vmem>>, %arg10: memref<8x1xf32, #tpu.memory_space<vmem>>, %arg11: memref<8x8xf32, #tpu.memory_space<vmem>>) attributes {dimension_semantics = [#tpu.dimension_semantics<parallel>, #tpu.dimension_semantics<parallel>, #tpu.dimension_semantics<parallel>, #tpu.dimension_semantics<arbitrary>], iteration_bounds = array<i64: 2, 4, 1, 1>, scalar_prefetch = 0 : i64, scratch_operands = 4 : i64, tpu.core_type = #tpu.core_type<tc>, window_params = [{transform_indices = @transform_0, window_bounds = array<i64: 1, 1, 8, 8>}, {transform_indices = @transform_1, window_bounds = array<i64: 1, 1, 8, 8>}, {transform_indices = @transform_2, window_bounds = array<i64: 1, 1, 8, 8>}, {transform_indices = @transform_3, window_bounds = array<i64: 1, 1, 8, 8>}]} {
    %c0_i32 = arith.constant 0 : i32
    %0 = arith.cmpi eq, %arg3, %c0_i32 : i32
    %1 = arith.extui %0 : i1 to i32
    %c0_i32_0 = arith.constant 0 : i32
    %2 = arith.cmpi ne, %1, %c0_i32_0 : i32
    scf.if %2 {
      %c0 = arith.constant 0 : index
      %c0_7 = arith.constant 0 : index
      %c0_8 = arith.constant 0 : index
      %c0_9 = arith.constant 0 : index
      %18 = vector.load %arg4[%c0, %c0_7, %c0_8, %c0_9] : memref<1x1x8x8xbf16, #tpu.memory_space<vmem>>, vector<1x1x8x8xbf16>
      %19 = vector.shape_cast %18 : vector<1x1x8x8xbf16> to vector<8x8xbf16>
      %20 = arith.extf %19 : vector<8x8xbf16> to vector<8x8xf32>
      %cst = arith.constant 0.353553385 : f32
      %21 = vector.broadcast %cst : f32 to vector<8x8xf32>
      %22 = arith.mulf %20, %21 : vector<8x8xf32>
      %23 = arith.truncf %22 : vector<8x8xf32> to vector<8x8xbf16>
      %c0_10 = arith.constant 0 : index
      %c0_11 = arith.constant 0 : index
      %24 = vector.load %arg8[%c0_10, %c0_11] : memref<8x8xbf16, #tpu.memory_space<vmem>>, vector<8x8xbf16>
      tpu.vector_store %arg8[%c0_10, %c0_11], %23 {strides = array<i32>} : memref<8x8xbf16, #tpu.memory_space<vmem>>, vector<8x8xbf16>,
      %cst_12 = arith.constant 0xFF800000 : f32
      %25 = vector.broadcast %cst_12 : f32 to vector<8x1xf32>
      %c0_13 = arith.constant 0 : index
      %c0_14 = arith.constant 0 : index
      %26 = vector.load %arg9[%c0_13, %c0_14] : memref<8x1xf32, #tpu.memory_space<vmem>>, vector<8x1xf32>
      tpu.vector_store %arg9[%c0_13, %c0_14], %25 {strides = array<i32>} : memref<8x1xf32, #tpu.memory_space<vmem>>, vector<8x1xf32>,
      %cst_15 = arith.constant 0.000000e+00 : f32
      %27 = vector.broadcast %cst_15 : f32 to vector<8x1xf32>
      %c0_16 = arith.constant 0 : index
      %c0_17 = arith.constant 0 : index
      %28 = vector.load %arg10[%c0_16, %c0_17] : memref<8x1xf32, #tpu.memory_space<vmem>>, vector<8x1xf32>
      tpu.vector_store %arg10[%c0_16, %c0_17], %27 {strides = array<i32>} : memref<8x1xf32, #tpu.memory_space<vmem>>, vector<8x1xf32>,
      %cst_18 = arith.constant 0.000000e+00 : f32
      %29 = vector.broadcast %cst_18 : f32 to vector<8x8xf32>
      %c0_19 = arith.constant 0 : index
      %c0_20 = arith.constant 0 : index
      %30 = vector.load %arg11[%c0_19, %c0_20] : memref<8x8xf32, #tpu.memory_space<vmem>>, vector<8x8xf32>
      tpu.vector_store %arg11[%c0_19, %c0_20], %29 {strides = array<i32>} : memref<8x8xf32, #tpu.memory_space<vmem>>, vector<8x8xf32>,
    } else {
    }
    %c8_i32 = arith.constant 8 : i32
    %3 = arith.muli %arg2, %c8_i32 : i32
    %c8_i32_1 = arith.constant 8 : i32
    %4 = arith.muli %arg3, %c8_i32_1 : i32
    %c7_i32 = arith.constant 7 : i32
    %5 = arith.addi %3, %c7_i32 : i32
    %c7_i32_2 = arith.constant 7 : i32
    %6 = arith.addi %4, %c7_i32_2 : i32
    %7 = arith.cmpi sle, %6, %3 : i32
    %8 = arith.cmpi sle, %4, %5 : i32
    %9 = arith.cmpi sgt, %6, %3 : i32
    %10 = arith.andi %8, %9 : i1
    %11 = arith.extui %7 : i1 to i32
    %c0_i32_3 = arith.constant 0 : i32
    %12 = arith.cmpi ne, %11, %c0_i32_3 : i32
    scf.if %12 {
      %c0 = arith.constant 0 : index
      %c0_7 = arith.constant 0 : index
      %18 = vector.load %arg8[%c0, %c0_7] : memref<8x8xbf16, #tpu.memory_space<vmem>>, vector<8x8xbf16>
      %c0_8 = arith.constant 0 : index
      %c0_9 = arith.constant 0 : index
      %c0_10 = arith.constant 0 : index
      %c0_11 = arith.constant 0 : index
      %19 = vector.load %arg5[%c0_8, %c0_9, %c0_10, %c0_11] : memref<1x1x8x8xbf16, #tpu.memory_space<vmem>>, vector<1x1x8x8xbf16>
      %20 = vector.shape_cast %19 : vector<1x1x8x8xbf16> to vector<8x8xbf16>
      %c0_12 = arith.constant 0 : index
      %c0_13 = arith.constant 0 : index
      %c0_14 = arith.constant 0 : index
      %c0_15 = arith.constant 0 : index
      %21 = vector.load %arg6[%c0_12, %c0_13, %c0_14, %c0_15] : memref<1x1x8x8xbf16, #tpu.memory_space<vmem>>, vector<1x1x8x8xbf16>
      %22 = vector.shape_cast %21 : vector<1x1x8x8xbf16> to vector<8x8xbf16>
      %cst = arith.constant dense<0.000000e+00> : vector<8x8xf32>
      %23 = tpu.matmul %18, %20, %cst {dimension_numbers = #tpu.dot_dimension_numbers<[1], [1], [0], [0], [0, 0, 1, 0], [], []>} : vector<8x8xbf16>, vector<8x8xbf16>, vector<8x8xf32> -> vector<8x8xf32>
      %c0_16 = arith.constant 0 : index
      %c0_17 = arith.constant 0 : index
      %24 = vector.load %arg9[%c0_16, %c0_17] : memref<8x1xf32, #tpu.memory_space<vmem>>, vector<8x1xf32>
      %cst_18 = arith.constant dense<0xFF800000> : vector<8xf32>
      %25 = vector.multi_reduction <maximumf>, %23, %cst_18 [1] : vector<8x8xf32> to vector<8xf32>
      %26 = vector.shape_cast %25 : vector<8xf32> to vector<8x1xf32>
      %27 = arith.maximumf %24, %26 : vector<8x1xf32>
      %28 = arith.subf %24, %27 : vector<8x1xf32>
      %29 = math.exp %28 : vector<8x1xf32>
      %30 = vector.broadcast %27 : vector<8x1xf32> to vector<8x8xf32>
      %31 = arith.subf %23, %30 : vector<8x8xf32>
      %32 = math.exp %31 : vector<8x8xf32>
      %c0_19 = arith.constant 0 : index
      %c0_20 = arith.constant 0 : index
      %33 = vector.load %arg10[%c0_19, %c0_20] : memref<8x1xf32, #tpu.memory_space<vmem>>, vector<8x1xf32>
      %34 = arith.mulf %29, %33 : vector<8x1xf32>
      %cst_21 = arith.constant dense<0.000000e+00> : vector<8xf32>
      %35 = vector.multi_reduction <add>, %32, %cst_21 [1] : vector<8x8xf32> to vector<8xf32>
      %36 = vector.shape_cast %35 : vector<8xf32> to vector<8x1xf32>
      %37 = arith.addf %34, %36 : vector<8x1xf32>
      %c0_22 = arith.constant 0 : index
      %c0_23 = arith.constant 0 : index
      %38 = vector.load %arg10[%c0_22, %c0_23] : memref<8x1xf32, #tpu.memory_space<vmem>>, vector<8x1xf32>
      tpu.vector_store %arg10[%c0_22, %c0_23], %37 {strides = array<i32>} : memref<8x1xf32, #tpu.memory_space<vmem>>, vector<8x1xf32>,
      %c0_24 = arith.constant 0 : index
      %c0_25 = arith.constant 0 : index
      %39 = vector.load %arg11[%c0_24, %c0_25] : memref<8x8xf32, #tpu.memory_space<vmem>>, vector<8x8xf32>
      %40 = vector.broadcast %29 : vector<8x1xf32> to vector<8x8xf32>
      %41 = arith.mulf %40, %39 : vector<8x8xf32>
      %42 = arith.truncf %32 : vector<8x8xf32> to vector<8x8xbf16>
      %cst_26 = arith.constant dense<0.000000e+00> : vector<8x8xf32>
      %43 = tpu.matmul %42, %22, %cst_26 {dimension_numbers = #tpu.dot_dimension_numbers<[1], [0], [0], [1], [0, 0, 1, 1], [], []>} : vector<8x8xbf16>, vector<8x8xbf16>, vector<8x8xf32> -> vector<8x8xf32>
      %44 = arith.addf %41, %43 : vector<8x8xf32>
      %c0_27 = arith.constant 0 : index
      %c0_28 = arith.constant 0 : index
      %45 = vector.load %arg11[%c0_27, %c0_28] : memref<8x8xf32, #tpu.memory_space<vmem>>, vector<8x8xf32>
      tpu.vector_store %arg11[%c0_27, %c0_28], %44 {strides = array<i32>} : memref<8x8xf32, #tpu.memory_space<vmem>>, vector<8x8xf32>,
      %c0_29 = arith.constant 0 : index
      %c0_30 = arith.constant 0 : index
      %46 = vector.load %arg9[%c0_29, %c0_30] : memref<8x1xf32, #tpu.memory_space<vmem>>, vector<8x1xf32>
      tpu.vector_store %arg9[%c0_29, %c0_30], %27 {strides = array<i32>} : memref<8x1xf32, #tpu.memory_space<vmem>>, vector<8x1xf32>,
    } else {
    }
    %13 = arith.extui %10 : i1 to i32
    %c0_i32_4 = arith.constant 0 : i32
    %14 = arith.cmpi ne, %13, %c0_i32_4 : i32
    scf.if %14 {
      %c0 = arith.constant 0 : index
      %c0_7 = arith.constant 0 : index
      %18 = vector.load %arg8[%c0, %c0_7] : memref<8x8xbf16, #tpu.memory_space<vmem>>, vector<8x8xbf16>
      %c0_8 = arith.constant 0 : index
      %c0_9 = arith.constant 0 : index
      %c0_10 = arith.constant 0 : index
      %c0_11 = arith.constant 0 : index
      %19 = vector.load %arg5[%c0_8, %c0_9, %c0_10, %c0_11] : memref<1x1x8x8xbf16, #tpu.memory_space<vmem>>, vector<1x1x8x8xbf16>
      %20 = vector.shape_cast %19 : vector<1x1x8x8xbf16> to vector<8x8xbf16>
      %c0_12 = arith.constant 0 : index
      %c0_13 = arith.constant 0 : index
      %c0_14 = arith.constant 0 : index
      %c0_15 = arith.constant 0 : index
      %21 = vector.load %arg6[%c0_12, %c0_13, %c0_14, %c0_15] : memref<1x1x8x8xbf16, #tpu.memory_space<vmem>>, vector<1x1x8x8xbf16>
      %22 = vector.shape_cast %21 : vector<1x1x8x8xbf16> to vector<8x8xbf16>
      %cst = arith.constant dense<0.000000e+00> : vector<8x8xf32>
      %23 = tpu.matmul %18, %20, %cst {dimension_numbers = #tpu.dot_dimension_numbers<[1], [1], [0], [0], [0, 0, 1, 0], [], []>} : vector<8x8xbf16>, vector<8x8xbf16>, vector<8x8xf32> -> vector<8x8xf32>
      %24 = tpu.iota {dimensions = array<i32: 0>} : vector<8x8xi32>
      %25 = vector.broadcast %3 : i32 to vector<8x8xi32>
      %26 = arith.addi %25, %24 : vector<8x8xi32>
      %27 = tpu.iota {dimensions = array<i32: 1>} : vector<8x8xi32>
      %28 = vector.broadcast %4 : i32 to vector<8x8xi32>
      %29 = arith.addi %28, %27 : vector<8x8xi32>
      %30 = arith.cmpi sle, %29, %26 : vector<8x8xi32>
      %cst_16 = arith.constant -1.000000e+30 : f32
      %31 = vector.broadcast %cst_16 : f32 to vector<8x8xf32>
      %32 = arith.select %30, %23, %31 : vector<8x8xi1>, vector<8x8xf32>
      %c0_17 = arith.constant 0 : index
      %c0_18 = arith.constant 0 : index
      %33 = vector.load %arg9[%c0_17, %c0_18] : memref<8x1xf32, #tpu.memory_space<vmem>>, vector<8x1xf32>
      %cst_19 = arith.constant dense<0xFF800000> : vector<8xf32>
      %34 = vector.multi_reduction <maximumf>, %32, %cst_19 [1] : vector<8x8xf32> to vector<8xf32>
      %35 = vector.shape_cast %34 : vector<8xf32> to vector<8x1xf32>
      %36 = arith.maximumf %33, %35 : vector<8x1xf32>
      %37 = arith.subf %33, %36 : vector<8x1xf32>
      %38 = math.exp %37 : vector<8x1xf32>
      %39 = vector.broadcast %36 : vector<8x1xf32> to vector<8x8xf32>
      %40 = arith.subf %32, %39 : vector<8x8xf32>
      %41 = math.exp %40 : vector<8x8xf32>
      %c0_20 = arith.constant 0 : index
      %c0_21 = arith.constant 0 : index
      %42 = vector.load %arg10[%c0_20, %c0_21] : memref<8x1xf32, #tpu.memory_space<vmem>>, vector<8x1xf32>
      %43 = arith.mulf %38, %42 : vector<8x1xf32>
      %cst_22 = arith.constant dense<0.000000e+00> : vector<8xf32>
      %44 = vector.multi_reduction <add>, %41, %cst_22 [1] : vector<8x8xf32> to vector<8xf32>
      %45 = vector.shape_cast %44 : vector<8xf32> to vector<8x1xf32>
      %46 = arith.addf %43, %45 : vector<8x1xf32>
      %c0_23 = arith.constant 0 : index
      %c0_24 = arith.constant 0 : index
      %47 = vector.load %arg10[%c0_23, %c0_24] : memref<8x1xf32, #tpu.memory_space<vmem>>, vector<8x1xf32>
      tpu.vector_store %arg10[%c0_23, %c0_24], %46 {strides = array<i32>} : memref<8x1xf32, #tpu.memory_space<vmem>>, vector<8x1xf32>,
      %c0_25 = arith.constant 0 : index
      %c0_26 = arith.constant 0 : index
      %48 = vector.load %arg11[%c0_25, %c0_26] : memref<8x8xf32, #tpu.memory_space<vmem>>, vector<8x8xf32>
      %49 = vector.broadcast %38 : vector<8x1xf32> to vector<8x8xf32>
      %50 = arith.mulf %49, %48 : vector<8x8xf32>
      %51 = arith.truncf %41 : vector<8x8xf32> to vector<8x8xbf16>
      %cst_27 = arith.constant dense<0.000000e+00> : vector<8x8xf32>
      %52 = tpu.matmul %51, %22, %cst_27 {dimension_numbers = #tpu.dot_dimension_numbers<[1], [0], [0], [1], [0, 0, 1, 1], [], []>} : vector<8x8xbf16>, vector<8x8xbf16>, vector<8x8xf32> -> vector<8x8xf32>
      %53 = arith.addf %50, %52 : vector<8x8xf32>
      %c0_28 = arith.constant 0 : index
      %c0_29 = arith.constant 0 : index
      %54 = vector.load %arg11[%c0_28, %c0_29] : memref<8x8xf32, #tpu.memory_space<vmem>>, vector<8x8xf32>
      tpu.vector_store %arg11[%c0_28, %c0_29], %53 {strides = array<i32>} : memref<8x8xf32, #tpu.memory_space<vmem>>, vector<8x8xf32>,
      %c0_30 = arith.constant 0 : index
      %c0_31 = arith.constant 0 : index
      %55 = vector.load %arg9[%c0_30, %c0_31] : memref<8x1xf32, #tpu.memory_space<vmem>>, vector<8x1xf32>
      tpu.vector_store %arg9[%c0_30, %c0_31], %36 {strides = array<i32>} : memref<8x1xf32, #tpu.memory_space<vmem>>, vector<8x1xf32>,
    } else {
    }
    %c0_i32_5 = arith.constant 0 : i32
    %15 = arith.cmpi eq, %arg3, %c0_i32_5 : i32
    %16 = arith.extui %15 : i1 to i32
    %c0_i32_6 = arith.constant 0 : i32
    %17 = arith.cmpi ne, %16, %c0_i32_6 : i32
    scf.if %17 {
      %c0 = arith.constant 0 : index
      %c0_7 = arith.constant 0 : index
      %18 = vector.load %arg11[%c0, %c0_7] : memref<8x8xf32, #tpu.memory_space<vmem>>, vector<8x8xf32>
      %c0_8 = arith.constant 0 : index
      %c0_9 = arith.constant 0 : index
      %19 = vector.load %arg10[%c0_8, %c0_9] : memref<8x1xf32, #tpu.memory_space<vmem>>, vector<8x1xf32>
      %20 = tpu.reciprocal %19 {approx = true} : vector<8x1xf32> -> vector<8x1xf32>
      %21 = vector.broadcast %20 : vector<8x1xf32> to vector<8x8xf32>
      %22 = arith.mulf %18, %21 : vector<8x8xf32>
      %23 = arith.truncf %22 : vector<8x8xf32> to vector<8x8xbf16>
      %c0_10 = arith.constant 0 : index
      %c0_11 = arith.constant 0 : index
      %c0_12 = arith.constant 0 : index
      %c0_13 = arith.constant 0 : index
      %24 = vector.load %arg7[%c0_10, %c0_11, %c0_12, %c0_13] : memref<1x1x8x8xbf16, #tpu.memory_space<vmem>>, vector<1x1x8x8xbf16>
      %25 = vector.shape_cast %24 : vector<1x1x8x8xbf16> to vector<8x8xbf16>
      %26 = vector.shape_cast %23 : vector<8x8xbf16> to vector<1x1x8x8xbf16>
      tpu.vector_store %arg7[%c0_10, %c0_11, %c0_12, %c0_13], %26 {strides = array<i32>} : memref<1x1x8x8xbf16, #tpu.memory_space<vmem>>, vector<1x1x8x8xbf16>,
    } else {
    }
    return
  }
  func.func @transform_0(%arg0: i32, %arg1: i32, %arg2: i32, %arg3: i32) -> (i32, i32, i32, i32) {
    %c0_i32 = arith.constant 0 : i32
    %c0_i32_0 = arith.constant 0 : i32
    return %arg0, %arg1, %arg2, %c0_i32 : i32, i32, i32, i32
  }
  func.func @transform_1(%arg0: i32, %arg1: i32, %arg2: i32, %arg3: i32) -> (i32, i32, i32, i32) {
    %0 = arith.minsi %arg3, %arg2 : i32
    %c0_i32 = arith.constant 0 : i32
    %c0_i32_0 = arith.constant 0 : i32
    return %arg0, %arg1, %0, %c0_i32 : i32, i32, i32, i32
  }
  func.func @transform_2(%arg0: i32, %arg1: i32, %arg2: i32, %arg3: i32) -> (i32, i32, i32, i32) {
    %0 = arith.minsi %arg3, %arg2 : i32
    %c0_i32 = arith.constant 0 : i32
    %c0_i32_0 = arith.constant 0 : i32
    return %arg0, %arg1, %0, %c0_i32 : i32, i32, i32, i32
  }
  func.func @transform_3(%arg0: i32, %arg1: i32, %arg2: i32, %arg3: i32) -> (i32, i32, i32, i32) {
    %c0_i32 = arith.constant 0 : i32
    %c0_i32_0 = arith.constant 0 : i32
    return %arg0, %arg1, %arg2, %c0_i32 : i32, i32, i32, i32
  }
}

module attributes {stable_mosaic.version = 11 : i64} {
  func.func @_matmul_bias_kernel(%arg0: i32, %arg1: i32, %arg2: i32, %arg3: memref<16x32xbf16, #tpu.memory_space<vmem>>, %arg4: memref<32x32xbf16, #tpu.memory_space<vmem>>, %arg5: memref<1x32xf32, #tpu.memory_space<vmem>>, %arg6: memref<16x32xf32, #tpu.memory_space<vmem>>, %arg7: memref<16x32xf32, #tpu.memory_space<vmem>>) attributes {dimension_semantics = [#tpu.dimension_semantics<parallel>, #tpu.dimension_semantics<parallel>, #tpu.dimension_semantics<arbitrary>], iteration_bounds = array<i64: 1, 1, 1>, scalar_prefetch = 0 : i64, scratch_operands = 1 : i64, tpu.core_type = #tpu.core_type<tc>, window_params = [{transform_indices = @transform_0, window_bounds = array<i64: 16, 32>}, {transform_indices = @transform_1, window_bounds = array<i64: 32, 32>}, {transform_indices = @transform_2, window_bounds = array<i64: 1, 32>}, {transform_indices = @transform_3, window_bounds = array<i64: 16, 32>}]} {
    %c0_i32 = arith.constant 0 : i32
    %0 = arith.cmpi eq, %arg2, %c0_i32 : i32
    %1 = arith.extui %0 : i1 to i32
    %c0_i32_0 = arith.constant 0 : i32
    %2 = arith.cmpi ne, %1, %c0_i32_0 : i32
    scf.if %2 {
      %cst_10 = arith.constant 0.000000e+00 : f32
      %12 = vector.broadcast %cst_10 : f32 to vector<16x32xf32>
      %c0_11 = arith.constant 0 : index
      %c0_12 = arith.constant 0 : index
      %13 = vector.load %arg7[%c0_11, %c0_12] : memref<16x32xf32, #tpu.memory_space<vmem>>, vector<16x32xf32>
      tpu.vector_store %arg7[%c0_11, %c0_12], %12 {strides = array<i32>} : memref<16x32xf32, #tpu.memory_space<vmem>>, vector<16x32xf32>,
    } else {
    }
    %c0 = arith.constant 0 : index
    %c0_1 = arith.constant 0 : index
    %3 = vector.load %arg7[%c0, %c0_1] : memref<16x32xf32, #tpu.memory_space<vmem>>, vector<16x32xf32>
    %c0_2 = arith.constant 0 : index
    %c0_3 = arith.constant 0 : index
    %4 = vector.load %arg3[%c0_2, %c0_3] : memref<16x32xbf16, #tpu.memory_space<vmem>>, vector<16x32xbf16>
    %c0_4 = arith.constant 0 : index
    %c0_5 = arith.constant 0 : index
    %5 = vector.load %arg4[%c0_4, %c0_5] : memref<32x32xbf16, #tpu.memory_space<vmem>>, vector<32x32xbf16>
    %cst = arith.constant dense<0.000000e+00> : vector<16x32xf32>
    %6 = tpu.matmul %4, %5, %cst {dimension_numbers = #tpu.dot_dimension_numbers<[1], [0], [0], [1], [0, 0, 1, 1], [], []>} : vector<16x32xbf16>, vector<32x32xbf16>, vector<16x32xf32> -> vector<16x32xf32>
    %7 = arith.addf %3, %6 : vector<16x32xf32>
    %c0_6 = arith.constant 0 : index
    %c0_7 = arith.constant 0 : index
    %8 = vector.load %arg7[%c0_6, %c0_7] : memref<16x32xf32, #tpu.memory_space<vmem>>, vector<16x32xf32>
    tpu.vector_store %arg7[%c0_6, %c0_7], %7 {strides = array<i32>} : memref<16x32xf32, #tpu.memory_space<vmem>>, vector<16x32xf32>,
    %c0_i32_8 = arith.constant 0 : i32
    %9 = arith.cmpi eq, %arg2, %c0_i32_8 : i32
    %10 = arith.extui %9 : i1 to i32
    %c0_i32_9 = arith.constant 0 : i32
    %11 = arith.cmpi ne, %10, %c0_i32_9 : i32
    scf.if %11 {
      %c0_10 = arith.constant 0 : index
      %c0_11 = arith.constant 0 : index
      %12 = vector.load %arg7[%c0_10, %c0_11] : memref<16x32xf32, #tpu.memory_space<vmem>>, vector<16x32xf32>
      %c0_12 = arith.constant 0 : index
      %c0_13 = arith.constant 0 : index
      %13 = vector.load %arg5[%c0_12, %c0_13] : memref<1x32xf32, #tpu.memory_space<vmem>>, vector<1x32xf32>
      %14 = vector.broadcast %13 : vector<1x32xf32> to vector<16x32xf32>
      %15 = arith.addf %12, %14 : vector<16x32xf32>
      %c0_14 = arith.constant 0 : index
      %c0_15 = arith.constant 0 : index
      %16 = vector.load %arg6[%c0_14, %c0_15] : memref<16x32xf32, #tpu.memory_space<vmem>>, vector<16x32xf32>
      tpu.vector_store %arg6[%c0_14, %c0_15], %15 {strides = array<i32>} : memref<16x32xf32, #tpu.memory_space<vmem>>, vector<16x32xf32>,
    } else {
    }
    return
  }
  func.func @transform_0(%arg0: i32, %arg1: i32, %arg2: i32) -> (i32, i32) {
    %c0_i32 = arith.constant 0 : i32
    return %arg0, %arg2 : i32, i32
  }
  func.func @transform_1(%arg0: i32, %arg1: i32, %arg2: i32) -> (i32, i32) {
    %c0_i32 = arith.constant 0 : i32
    return %arg2, %arg1 : i32, i32
  }
  func.func @transform_2(%arg0: i32, %arg1: i32, %arg2: i32) -> (i32, i32) {
    %c0_i32 = arith.constant 0 : i32
    %c0_i32_0 = arith.constant 0 : i32
    return %c0_i32, %arg1 : i32, i32
  }
  func.func @transform_3(%arg0: i32, %arg1: i32, %arg2: i32) -> (i32, i32) {
    %c0_i32 = arith.constant 0 : i32
    return %arg0, %arg1 : i32, i32
  }
}

</mosaic_0001>

<llo_original>
// kernel: flash_attention_with_rotary_forward.3
$region0: #{flash_attention_with_rotary_forward.3}
  #allocation0 [shape = 'u32[]', space=smem, size = 0x4, offset = 0x4, fixed_abs, tag = 'smem constant byte address 0x4 - core index']
  #allocation1 [shape = 'u32[72,128]{1,0:T(1,128)}', space=vmem, size = 0x9000, scoped, tag = 'internal scratch']
  #allocation2 [shape = 'f32[16,96]{1,0:T(8,128)}', space=vmem, size = 0x2000, scoped, tag = 'scratch operand']
  %s0 = inlined_call_operand.vmem [shape: bf16[16,32], index: 0, kind: input, shape index: {}]
  %s1 = inlined_call_operand.vmem [shape: bf16[32,96], index: 1, kind: input, shape index: {}]
  %s2 = inlined_call_operand.vmem [shape: f32[1,96], index: 2, kind: input, shape index: {}]
  %s3 = inlined_call_operand.vmem [shape: bf16[16,96], index: 3, kind: output, shape index: {}]
  %s4 = sld [smem:[#allocation0]]
  $region30: #{flash_attention_with_rotary_forward.3} parent=0
    _
  %s6 = ssub.s32 1, %s4
  %s7 = scalar_select 0, %s6, %s4
  // Predicated region
  $region2: #{flash_attention_with_rotary_forward.3} parent=0 // pred_check
    _
  $region3: #{flash_attention_with_rotary_forward.3} parent=0 // pred_check_branch
    %9 = sbr.rel (0) target = $region5
  $region4: #{flash_attention_with_rotary_forward.3} parent=0 // pred_region
    _
  $region5: #{flash_attention_with_rotary_forward.3} parent=0 // pred_fallthru
    _
  // Predicated region
  $region6: #{flash_attention_with_rotary_forward.3} parent=0 // pred_check
    _
  $region7: #{flash_attention_with_rotary_forward.3} parent=0 // pred_check_branch
    %11 = sbr.rel (0) target = $region9
  $region8: #{flash_attention_with_rotary_forward.3} parent=0 // pred_region
    _
  $region9: #{flash_attention_with_rotary_forward.3} parent=0 // pred_fallthru
    _
  // Predicated region
  $region10: #{flash_attention_with_rotary_forward.3} parent=0 // pred_check
    _
  $region11: #{flash_attention_with_rotary_forward.3} parent=0 // pred_check_branch
    %13 = sbr.rel (0) target = $region13
  $region12: #{flash_attention_with_rotary_forward.3} parent=0 // pred_region
    _
  $region13: #{flash_attention_with_rotary_forward.3} parent=0 // pred_fallthru
    _
  %p15 = scmp.eq.s32.totalorder 0, 0
  // Predicated region
  $region14: #{flash_attention_with_rotary_forward.3} parent=0 // pred_check
    %p16 = pneg %p15
  $region15: #{flash_attention_with_rotary_forward.3} parent=0 // pred_check_branch
    %18 = sbr.rel (%p16) target = $region17
  $region16: #{flash_attention_with_rotary_forward.3} parent=0 // pred_region
    %vm19 = vcmask 785408
    %20 = vst.msk [vmem:[#allocation2] sm:$0xff] %vm19, 0.0
    %21 = vst.msk [vmem:[#allocation2 + $0x8] sm:$0xff] %vm19, 0.0
  $region17: #{flash_attention_with_rotary_forward.3} parent=0 // pred_fallthru
    _
  %v22 = vld [vmem:[#allocation2] sm:$0xff]
  %v23 = vld [vmem:[#allocation2 + $0x8] sm:$0xff]
  %v24 = vld [vmem:[%s0] sm:$0xf]
  %v25 = vld [vmem:[%s0 + $0x4] sm:$0xf]
  %v26 = vld [vmem:[%s1] sm:$0xf]
  %v27 = vld [vmem:[%s1 + $0x4] sm:$0xf]
  %v28 = vld [vmem:[%s1 + $0x8] sm:$0xf]
  %v29 = vld [vmem:[%s1 + $0xc] sm:$0xf]
  %v32 = vunpack.c.l.b16 %v24
  %v33 = vunpack.c.l.b16 %v25
  %v34 = vpack.c.b16 %v33, %v32
  %v39 = vunpack.c.l.b16 %v26
  %v40 = vunpack.c.l.b16 %v27
  %v41 = vunpack.c.l.b16 %v28
  %v42 = vunpack.c.l.b16 %v29
  %v43 = vpack.c.b16 %v40, %v39
  %v44 = vpack.c.b16 %v42, %v41
  %vm47 = vcmask 261120
  %v49 = vsel %vm47, %v34, 0
  %51 = vmatpush.bf16.msra.mxu0 0
  %52 = vmatpush.bf16.msra.mxu0 0
  %53 = vmatpush.bf16.msra.mxu0 0
  %54 = vmatpush.bf16.msra.mxu0 0
  %55 = vmatpush.bf16.msra.mxu0 0
  %56 = vmatpush.bf16.msra.mxu0 0
  %57 = vmatpush.bf16.msra.mxu0 %v44
  %58 = vmatpush.bf16.msra.mxu0 %v43
  %59 = vmatmul.bf16.gmra.mxu0 %v49
  %v60 = vpop.f32.mrf.mxu0
  %v61 = vadd.f32 0.0, %v60
  %v62 = vpop.f32.mrf.mxu0
  %v63 = vadd.f32 0.0, %v62
  %64 = vdwg.mxu0
  %v65 = vadd.f32 %v22, %v61
  %v66 = vadd.f32 %v23, %v63
  %vm67 = vcmask 785408
  %68 = vst.msk [vmem:[#allocation2] sm:$0xff] %vm67, %v65
  %69 = vst.msk [vmem:[#allocation2 + $0x8] sm:$0xff] %vm67, %v66
  // Predicated region
  $region18: #{flash_attention_with_rotary_forward.3} parent=0 // pred_check
    %p70 = pneg %p15
  $region19: #{flash_attention_with_rotary_forward.3} parent=0 // pred_check_branch
    %72 = sbr.rel (%p70) target = $region21
  $region20: #{flash_attention_with_rotary_forward.3} parent=0 // pred_region
    %v73 = vld [vmem:[#allocation2] sm:$0xff]
    %v74 = vld [vmem:[#allocation2 + $0x8] sm:$0xff]
    %v75 = vld [vmem:[%s2] sm:$0x1]
    %v77 = vperm.slane %v75, 0
    %v79 = vadd.f32 %v73, %v77
    %v80 = vadd.f32 %v74, %v77
    %v81 = vpack.c.bf16 %v79, %v79
    %v82 = vpack.c.bf16 %v80, %v80
    %vm83 = vcmask 781312
    %84 = vst.msk [vmem:[%s3] sm:$0xf] %vm83, %v81
    %85 = vst.msk [vmem:[%s3 + $0x4] sm:$0xf] %vm83, %v82
  $region21: #{flash_attention_with_rotary_forward.3} parent=0 // pred_fallthru
    _
  // Predicated region
  $region22: #{flash_attention_with_rotary_forward.3} parent=0 // pred_check
    _
  $region23: #{flash_attention_with_rotary_forward.3} parent=0 // pred_check_branch
    %87 = sbr.rel (0) target = $region25
  $region24: #{flash_attention_with_rotary_forward.3} parent=0 // pred_region
    _
  $region25: #{flash_attention_with_rotary_forward.3} parent=0 // pred_fallthru
    _
  // Predicated region
  $region26: #{flash_attention_with_rotary_forward.3} parent=0 // pred_check
    _
  $region27: #{flash_attention_with_rotary_forward.3} parent=0 // pred_check_branch
    %89 = sbr.rel (0) target = $region29
  $region28: #{flash_attention_with_rotary_forward.3} parent=0 // pred_region
    _
  $region29: #{flash_attention_with_rotary_forward.3} parent=0 // pred_fallthru
    _

// kernel: flash_attention_with_rotary_forward.5
$region0: #{flash_attention_with_rotary_forward.5}
  #allocation0 [shape = 'u32[]', space=smem, size = 0x4, offset = 0x4, fixed_abs, tag = 'smem constant byte address 0x4 - core index']
  #allocation1 [shape = 'u32[72,128]{1,0:T(1,128)}', space=vmem, size = 0x9000, scoped, tag = 'internal scratch']
  #allocation2 [shape = 'f32[16,32]{1,0:T(8,128)}', space=vmem, size = 0x2000, scoped, tag = 'scratch operand']
  %s0 = inlined_call_operand.vmem [shape: bf16[16,32], index: 0, kind: input, shape index: {}]
  %s1 = inlined_call_operand.vmem [shape: bf16[32,32], index: 1, kind: input, shape index: {}]
  %s2 = inlined_call_operand.vmem [shape: f32[1,32], index: 2, kind: input, shape index: {}]
  %s3 = inlined_call_operand.hbm [shape: f32[16,32], index: 3, kind: output, shape index: {}]
  %s4 = sld [smem:[#allocation0]]
  $region30: #{flash_attention_with_rotary_forward.5} parent=0
    _
  %s6 = ssub.s32 1, %s4
  %s7 = scalar_select 0, %s6, %s4
  $region1: #{flash_attention_with_rotary_forward.5} parent=0
    #allocation3 [shape = 'u8[8192]{0}', space=vmem, size = 0x2000, scoped, tag = 'output window, operand 0, single buffered']
    #allocation4 [shape = 's32[1]{0}', space=sflag, size = 0x4, scoped, tag = 'scoped memory for flash_attention_with_rotary_forward.5']
    %8 = vsyncpa [#allocation4], 0
    // Predicated region
    $region2: #{flash_attention_with_rotary_forward.5} parent=1 // pred_check
      _
    $region3: #{flash_attention_with_rotary_forward.5} parent=1 // pred_check_branch
      %10 = sbr.rel (0) target = $region5
    $region4: #{flash_attention_with_rotary_forward.5} parent=1 // pred_region
      _
    $region5: #{flash_attention_with_rotary_forward.5} parent=1 // pred_fallthru
      _
    // Predicated region
    $region6: #{flash_attention_with_rotary_forward.5} parent=1 // pred_check
      _
    $region7: #{flash_attention_with_rotary_forward.5} parent=1 // pred_check_branch
      %12 = sbr.rel (0) target = $region9
    $region8: #{flash_attention_with_rotary_forward.5} parent=1 // pred_region
      _
    $region9: #{flash_attention_with_rotary_forward.5} parent=1 // pred_fallthru
      _
    // Predicated region
    $region10: #{flash_attention_with_rotary_forward.5} parent=1 // pred_check
      _
    $region11: #{flash_attention_with_rotary_forward.5} parent=1 // pred_check_branch
      %14 = sbr.rel (0) target = $region13
    $region12: #{flash_attention_with_rotary_forward.5} parent=1 // pred_region
      _
    $region13: #{flash_attention_with_rotary_forward.5} parent=1 // pred_fallthru
      _
    %p16 = scmp.eq.s32.totalorder 0, 0
    // Predicated region
    $region14: #{flash_attention_with_rotary_forward.5} parent=1 // pred_check
      %p17 = pneg %p16
    $region15: #{flash_attention_with_rotary_forward.5} parent=1 // pred_check_branch
      %19 = sbr.rel (%p17) target = $region17
    $region16: #{flash_attention_with_rotary_forward.5} parent=1 // pred_region
      %vm20 = vcmask 261120
      %21 = vst.msk [vmem:[#allocation2] sm:$0xff] %vm20, 0.0
      %22 = vst.msk [vmem:[#allocation2 + $0x8] sm:$0xff] %vm20, 0.0
    $region17: #{flash_attention_with_rotary_forward.5} parent=1 // pred_fallthru
      _
    %v23 = vld [vmem:[#allocation2] sm:$0xff]
    %v24 = vld [vmem:[#allocation2 + $0x8] sm:$0xff]
    %v25 = vld [vmem:[%s0] sm:$0xf]
    %v26 = vld [vmem:[%s0 + $0x4] sm:$0xf]
    %v27 = vld [vmem:[%s1] sm:$0xf]
    %v28 = vld [vmem:[%s1 + $0x4] sm:$0xf]
    %v29 = vld [vmem:[%s1 + $0x8] sm:$0xf]
    %v30 = vld [vmem:[%s1 + $0xc] sm:$0xf]
    %v33 = vunpack.c.l.b16 %v25
    %v34 = vunpack.c.l.b16 %v26
    %v35 = vpack.c.b16 %v34, %v33
    %v40 = vunpack.c.l.b16 %v27
    %v41 = vunpack.c.l.b16 %v28
    %v42 = vunpack.c.l.b16 %v29
    %v43 = vunpack.c.l.b16 %v30
    %v44 = vpack.c.b16 %v41, %v40
    %v45 = vpack.c.b16 %v43, %v42
    %vm48 = vcmask 261120
    %v50 = vsel %vm48, %v35, 0
    %52 = vmatpush.bf16.msra.mxu0 0
    %53 = vmatpush.bf16.msra.mxu0 0
    %54 = vmatpush.bf16.msra.mxu0 0
    %55 = vmatpush.bf16.msra.mxu0 0
    %56 = vmatpush.bf16.msra.mxu0 0
    %57 = vmatpush.bf16.msra.mxu0 0
    %58 = vmatpush.bf16.msra.mxu0 %v45
    %59 = vmatpush.bf16.msra.mxu0 %v44
    %60 = vmatmul.bf16.gmra.mxu0 %v50
    %v61 = vpop.f32.mrf.mxu0
    %v62 = vadd.f32 0.0, %v61
    %v63 = vpop.f32.mrf.mxu0
    %v64 = vadd.f32 0.0, %v63
    %65 = vdwg.mxu0
    %v66 = vadd.f32 %v23, %v62
    %v67 = vadd.f32 %v24, %v64
    %68 = vst.msk [vmem:[#allocation2] sm:$0xff] %vm48, %v66
    %69 = vst.msk [vmem:[#allocation2 + $0x8] sm:$0xff] %vm48, %v67
    // Predicated region
    $region18: #{flash_attention_with_rotary_forward.5} parent=1 // pred_check
      %p70 = pneg %p16
    $region19: #{flash_attention_with_rotary_forward.5} parent=1 // pred_check_branch
      %72 = sbr.rel (%p70) target = $region21
    $region20: #{flash_attention_with_rotary_forward.5} parent=1 // pred_region
      %v73 = vld [vmem:[#allocation2] sm:$0xff]
      %v74 = vld [vmem:[#allocation2 + $0x8] sm:$0xff]
      %v75 = vld [vmem:[%s2] sm:$0x1]
      %v77 = vperm.slane %v75, 0
      %v79 = vadd.f32 %v73, %v77
      %v80 = vadd.f32 %v74, %v77
      %81 = vst.msk [vmem:[#allocation3] sm:$0xff] %vm48, %v79
      %82 = vst.msk [vmem:[#allocation3 + $0x8] sm:$0xff] %vm48, %v80
    $region21: #{flash_attention_with_rotary_forward.5} parent=1 // pred_fallthru
      _
    // Predicated region
    $region22: #{flash_attention_with_rotary_forward.5} parent=1 // pred_check
      _
    $region23: #{flash_attention_with_rotary_forward.5} parent=1 // pred_check_branch
      %84 = sbr.rel (0) target = $region25
    $region24: #{flash_attention_with_rotary_forward.5} parent=1 // pred_region
      %86 = vsyncadd [#allocation4], 0
      %s87 = sshll.u32 [#allocation3], 4
      %s88 = int_to_ptr.vmem [resolvable:$true] %s87
      %s89 = sshll.u32 %s3, 4
      %s90 = int_to_ptr.hbm [resolvable:$true] %s89
      %95 = dma.vmem_to_hbm [thread:$0]  %s88, 256, %s90, [#allocation4], 128, 128, 8
    $region25: #{flash_attention_with_rotary_forward.5} parent=1 // pred_fallthru
      _
    // Predicated region
    $region26: #{flash_attention_with_rotary_forward.5} parent=1 // pred_check
      _
    $region27: #{flash_attention_with_rotary_forward.5} parent=1 // pred_check_branch
      %97 = sbr.rel (0) target = $region29
    $region28: #{flash_attention_with_rotary_forward.5} parent=1 // pred_region
      %99 = dma.done [#allocation4], 256
    $region29: #{flash_attention_with_rotary_forward.5} parent=1 // pred_fallthru
      _
    %100 = vsyncpa [#allocation4], 1

// kernel: flash_attention_with_rotary_forward.4
$region0: #{flash_attention_with_rotary_forward.4}
  #allocation0 [shape = 'u32[]', space=smem, size = 0x4, offset = 0x4, fixed_abs, tag = 'smem constant byte address 0x4 - core index']
  #allocation1 [shape = 'u32[72,128]{1,0:T(1,128)}', space=vmem, size = 0x9000, scoped, tag = 'internal scratch']
  #allocation2 [shape = 'bf16[8,8]{1,0:T(8,128)(2,1)}', space=vmem, size = 0x800, scoped, tag = 'scratch operand']
  #allocation3 [shape = 'f32[8,1]{1,0:T(8,128)}', space=vmem, size = 0x1000, scoped, tag = 'scratch operand']
  #allocation4 [shape = 'f32[8,1]{1,0:T(8,128)}', space=vmem, size = 0x1000, scoped, tag = 'scratch operand']
  #allocation5 [shape = 'f32[8,8]{1,0:T(8,128)}', space=vmem, size = 0x1000, scoped, tag = 'scratch operand']
  %s0 = inlined_call_operand.vmem [shape: bf16[2,4,8,8], index: 0, kind: input, shape index: {}]
  %s1 = inlined_call_operand.vmem [shape: bf16[2,4,8,8], index: 1, kind: input, shape index: {}]
  %s2 = inlined_call_operand.vmem [shape: bf16[2,4,8,8], index: 2, kind: input, shape index: {}]
  %s3 = inlined_call_operand.vmem [shape: bf16[2,4,8,8], index: 3, kind: output, shape index: {}]
  %s4 = sld [smem:[#allocation0]]
  $region61: #{flash_attention_with_rotary_forward.4} parent=0
    _
  %s6 = ssub.s32 1, %s4
  %s7 = scalar_select 0, %s6, %s4
  loop: start=0, step=1, limit=10
  $region2: #{flash_attention_with_rotary_forward.4} parent=0 // loop_pre_header
    _
  $region3: #{flash_attention_with_rotary_forward.4} parent=0 // loop_header
    %s9 = sphi 0, %s13
    %p10 = scmp.ge.s32.totalorder %s9, 10
    %s16 = sphi 0, %s42
    %s17 = sphi 0, %s38
    %s18 = sphi 0, %s34
    %s19 = sphi 0, %s30
    %s20 = sphi 0, %s16
    %s21 = sphi 0, %s17
    %s22 = sphi 0, %s18
    %s23 = sphi 0, %s19
    %s24 = sphi 0, %s20
    %s25 = sphi 0, %s21
    %s26 = sphi 0, %s22
    %s27 = sphi 0, %s23
    %s49 = sphi 0, %s51
    %s52 = sphi 0, %s49
    %s53 = sphi 0, %s52
    %s69 = sphi 0, %s53
    %s83 = sphi 0, %s85
    %s86 = sphi 0, %s83
    %s87 = sphi 0, %s86
    %s103 = sphi 0, %s87
    %s117 = sphi 0, %s119
    %s120 = sphi 0, %s117
    %s121 = sphi 0, %s120
    %s137 = sphi 0, %s121
    %s147 = sphi 0, %s149
    %s150 = sphi 0, %s147
    %s151 = sphi 0, %s150
    %s167 = sphi 0, %s151
  $region4: #{flash_attention_with_rotary_forward.4} parent=0 // loop_header_branch
    %12 = sbr.rel (%p10) target = $region8
  $region5: #{flash_attention_with_rotary_forward.4} parent=0 // loop_body
    %s14 = ssub.s32 %s9, 1
    %s15 = ssub.s32 %s9, 2
    %s28 = sadd.s32 1, %s19
    %p29 = scmp.ge.s32.totalorder %s28, 1
    %s30 = scalar_select %p29, 0, %s28
    %s31 = sadd.s32 1, %s18
    %s32 = scalar_select %p29, %s31, %s18
    %p33 = scmp.ge.s32.totalorder %s32, 1
    %s34 = scalar_select %p33, 0, %s32
    %s35 = sadd.s32 1, %s17
    %s36 = scalar_select %p33, %s35, %s17
    %p37 = scmp.ge.s32.totalorder %s36, 4
    %s38 = scalar_select %p37, 0, %s36
    %s39 = sadd.s32 1, %s16
    %s40 = scalar_select %p37, %s39, %s16
    %p41 = scmp.ge.s32.totalorder %s40, 2
    %s42 = scalar_select %p41, 0, %s40
    %s43 = ssub.s32 %s16, %s42
    %s44 = ssub.s32 %s17, %s38
    %s45 = sor.u32 %s43, %s44
    %s46 = ssub.s32 %s18, %s34
    %s47 = sor.u32 %s45, %s46
    %p48 = scmp.eq.s32.totalorder %s47, 0
    %s50 = sadd.s32 %s49, 1
    %s51 = scalar_select %p48, %s49, %s50
    %p54 = pneg %p48
    %p55 = scmp.eq.s32.totalorder %s9, 7
    %p56 = por %p54, %p55
    %p57 = scmp.ne.s32.totalorder %s49, %s52
    %p58 = scmp.eq.s32.totalorder %s9, 0
    %p59 = por %p57, %p58
    %p60 = scmp.ne.s32.totalorder %s49, %s52
    %p61 = scmp.eq.s32.totalorder %s14, 7
    %p62 = por %p60, %p61
    %p63 = scmp.ne.s32.totalorder %s52, %s53
    %p64 = scmp.eq.s32.totalorder %s14, 0
    %p65 = por %p63, %p64
    %p66 = scmp.ne.s32.totalorder %s52, %s53
    %p67 = scmp.eq.s32.totalorder %s15, 7
    %p68 = por %p66, %p67
    %p70 = scmp.ne.s32.totalorder %s53, %s69
    %p71 = scmp.eq.s32.totalorder %s15, 0
    %p72 = por %p70, %p71
    %p73 = scmp.lt.s32.totalorder %s19, %s18
    %s74 = scalar_select %p73, %s19, %s18
    %p75 = scmp.lt.s32.totalorder %s30, %s34
    %s76 = scalar_select %p75, %s30, %s34
    %s77 = ssub.s32 %s16, %s42
    %s78 = ssub.s32 %s17, %s38
    %s79 = sor.u32 %s77, %s78
    %s80 = ssub.s32 %s74, %s76
    %s81 = sor.u32 %s79, %s80
    %p82 = scmp.eq.s32.totalorder %s81, 0
    %s84 = sadd.s32 %s83, 1
    %s85 = scalar_select %p82, %s83, %s84
    %p88 = pneg %p82
    %p89 = scmp.eq.s32.totalorder %s9, 7
    %p90 = por %p88, %p89
    %p91 = scmp.ne.s32.totalorder %s83, %s86
    %p92 = scmp.eq.s32.totalorder %s9, 0
    %p93 = por %p91, %p92
    %p94 = scmp.ne.s32.totalorder %s83, %s86
    %p95 = scmp.eq.s32.totalorder %s14, 7
    %p96 = por %p94, %p95
    %p97 = scmp.ne.s32.totalorder %s86, %s87
    %p98 = scmp.eq.s32.totalorder %s14, 0
    %p99 = por %p97, %p98
    %p100 = scmp.ne.s32.totalorder %s86, %s87
    %p101 = scmp.eq.s32.totalorder %s15, 7
    %p102 = por %p100, %p101
    %p104 = scmp.ne.s32.totalorder %s87, %s103
    %p105 = scmp.eq.s32.totalorder %s15, 0
    %p106 = por %p104, %p105
    %p107 = scmp.lt.s32.totalorder %s19, %s18
    %s108 = scalar_select %p107, %s19, %s18
    %p109 = scmp.lt.s32.totalorder %s30, %s34
    %s110 = scalar_select %p109, %s30, %s34
    %s111 = ssub.s32 %s16, %s42
    %s112 = ssub.s32 %s17, %s38
    %s113 = sor.u32 %s111, %s112
    %s114 = ssub.s32 %s108, %s110
    %s115 = sor.u32 %s113, %s114
    %p116 = scmp.eq.s32.totalorder %s115, 0
    %s118 = sadd.s32 %s117, 1
    %s119 = scalar_select %p116, %s117, %s118
    %p122 = pneg %p116
    %p123 = scmp.eq.s32.totalorder %s9, 7
    %p124 = por %p122, %p123
    %p125 = scmp.ne.s32.totalorder %s117, %s120
    %p126 = scmp.eq.s32.totalorder %s9, 0
    %p127 = por %p125, %p126
    %p128 = scmp.ne.s32.totalorder %s117, %s120
    %p129 = scmp.eq.s32.totalorder %s14, 7
    %p130 = por %p128, %p129
    %p131 = scmp.ne.s32.totalorder %s120, %s121
    %p132 = scmp.eq.s32.totalorder %s14, 0
    %p133 = por %p131, %p132
    %p134 = scmp.ne.s32.totalorder %s120, %s121
    %p135 = scmp.eq.s32.totalorder %s15, 7
    %p136 = por %p134, %p135
    %p138 = scmp.ne.s32.totalorder %s121, %s137
    %p139 = scmp.eq.s32.totalorder %s15, 0
    %p140 = por %p138, %p139
    %s141 = ssub.s32 %s16, %s42
    %s142 = ssub.s32 %s17, %s38
    %s143 = sor.u32 %s141, %s142
    %s144 = ssub.s32 %s18, %s34
    %s145 = sor.u32 %s143, %s144
    %p146 = scmp.eq.s32.totalorder %s145, 0
    %s148 = sadd.s32 %s147, 1
    %s149 = scalar_select %p146, %s147, %s148
    %p152 = pneg %p146
    %p153 = scmp.eq.s32.totalorder %s9, 7
    %p154 = por %p152, %p153
    %p155 = scmp.ne.s32.totalorder %s147, %s150
    %p156 = scmp.eq.s32.totalorder %s9, 0
    %p157 = por %p155, %p156
    %p158 = scmp.ne.s32.totalorder %s147, %s150
    %p159 = scmp.eq.s32.totalorder %s14, 7
    %p160 = por %p158, %p159
    %p161 = scmp.ne.s32.totalorder %s150, %s151
    %p162 = scmp.eq.s32.totalorder %s14, 0
    %p163 = por %p161, %p162
    %p164 = scmp.ne.s32.totalorder %s150, %s151
    %p165 = scmp.eq.s32.totalorder %s15, 7
    %p166 = por %p164, %p165
    %p168 = scmp.ne.s32.totalorder %s151, %s167
    %p169 = scmp.eq.s32.totalorder %s15, 0
    %p170 = por %p168, %p169
    %p171 = scmp.le.s32.totalorder 1, %s9
    %p172 = scmp.lt.s32.totalorder %s9, 9
    %p173 = pnand %p171, %p172
    %p174 = pneg %p173
    // Predicated region
    $region9: #{flash_attention_with_rotary_forward.4} parent=5 // pred_check
      _
    $region10: #{flash_attention_with_rotary_forward.4} parent=5 // pred_check_branch
      %176 = sbr.rel (%p173) target = $region12
    $region11: #{flash_attention_with_rotary_forward.4} parent=5 // pred_region
      %s177 = ssub.s32 %s9, 1
    $region12: #{flash_attention_with_rotary_forward.4} parent=5 // pred_fallthru
      _
    %p178 = scmp.lt.s32.totalorder %s9, 8
    // Predicated region
    $region13: #{flash_attention_with_rotary_forward.4} parent=5 // pred_check
      %p179 = pneg %p178
    $region14: #{flash_attention_with_rotary_forward.4} parent=5 // pred_check_branch
      %181 = sbr.rel (%p179) target = $region16
    $region15: #{flash_attention_with_rotary_forward.4} parent=5 // pred_region
      // Predicated region
      $region17: #{flash_attention_with_rotary_forward.4} parent=15 // pred_check
        %p182 = pneg %p59
      $region18: #{flash_attention_with_rotary_forward.4} parent=15 // pred_check_branch
        %184 = sbr.rel (%p182) target = $region20
      $region19: #{flash_attention_with_rotary_forward.4} parent=15 // pred_region
        %p185 = scmp.lt.s32.totalorder %s16, 1
        %s186 = scalar_select %p185, %s16, 1
        %p187 = scmp.lt.s32.totalorder %s17, 3
        %s188 = scalar_select %p187, %s17, 3
        %p189 = scmp.lt.s32.totalorder %s18, 0
        %s190 = scalar_select %p189, %s18, 0
        %s191 = sadd.s32 %s190, %s188
        %s192 = smul.addr %s186, 4
        %s193 = sadd.s32 %s191, %s192
        %s194 = smul.addr %s193, 4
        %s195 = scalar_lea.vmem %s0, %s194
      $region20: #{flash_attention_with_rotary_forward.4} parent=15 // pred_fallthru
        _
      // Predicated region
      $region21: #{flash_attention_with_rotary_forward.4} parent=15 // pred_check
        %p196 = pneg %p93
      $region22: #{flash_attention_with_rotary_forward.4} parent=15 // pred_check_branch
        %198 = sbr.rel (%p196) target = $region24
      $region23: #{flash_attention_with_rotary_forward.4} parent=15 // pred_region
        %p199 = scmp.lt.s32.totalorder %s19, %s18
        %s200 = scalar_select %p199, %s19, %s18
        %p201 = scmp.lt.s32.totalorder %s16, 1
        %s202 = scalar_select %p201, %s16, 1
        %p203 = scmp.lt.s32.totalorder %s17, 3
        %s204 = scalar_select %p203, %s17, 3
        %p205 = scmp.lt.s32.totalorder %s200, 0
        %s206 = scalar_select %p205, %s200, 0
        %s207 = sadd.s32 %s206, %s204
        %s208 = smul.addr %s202, 4
        %s209 = sadd.s32 %s207, %s208
        %s210 = smul.addr %s209, 4
        %s211 = scalar_lea.vmem %s1, %s210
        %p212 = scmp.lt.s32.totalorder %s19, %s18
        %s213 = scalar_select %p212, %s19, %s18
      $region24: #{flash_attention_with_rotary_forward.4} parent=15 // pred_fallthru
        _
      // Predicated region
      $region25: #{flash_attention_with_rotary_forward.4} parent=15 // pred_check
        %p214 = pneg %p127
      $region26: #{flash_attention_with_rotary_forward.4} parent=15 // pred_check_branch
        %216 = sbr.rel (%p214) target = $region28
      $region27: #{flash_attention_with_rotary_forward.4} parent=15 // pred_region
        %p217 = scmp.lt.s32.totalorder %s19, %s18
        %s218 = scalar_select %p217, %s19, %s18
        %p219 = scmp.lt.s32.totalorder %s16, 1
        %s220 = scalar_select %p219, %s16, 1
        %p221 = scmp.lt.s32.totalorder %s17, 3
        %s222 = scalar_select %p221, %s17, 3
        %p223 = scmp.lt.s32.totalorder %s218, 0
        %s224 = scalar_select %p223, %s218, 0
        %s225 = sadd.s32 %s224, %s222
        %s226 = smul.addr %s220, 4
        %s227 = sadd.s32 %s225, %s226
        %s228 = smul.addr %s227, 4
        %s229 = scalar_lea.vmem %s2, %s228
        %p230 = scmp.lt.s32.totalorder %s19, %s18
        %s231 = scalar_select %p230, %s19, %s18
      $region28: #{flash_attention_with_rotary_forward.4} parent=15 // pred_fallthru
        _
    $region16: #{flash_attention_with_rotary_forward.4} parent=5 // pred_fallthru
      _
    %p232 = scmp.le.s32.totalorder 1, %s9
    %p233 = scmp.lt.s32.totalorder %s9, 9
    %p234 = pnand %p232, %p233
    %p235 = pneg %p234
    // Predicated region
    $region29: #{flash_attention_with_rotary_forward.4} parent=5 // pred_check
      _
    $region30: #{flash_attention_with_rotary_forward.4} parent=5 // pred_check_branch
      %237 = sbr.rel (%p234) target = $region32
    $region31: #{flash_attention_with_rotary_forward.4} parent=5 // pred_region
      %s238 = ssub.s32 %s9, 1
      %p239 = scmp.lt.s32.totalorder %s20, 1
      %s240 = scalar_select %p239, %s20, 1
      %p241 = scmp.lt.s32.totalorder %s21, 3
      %s242 = scalar_select %p241, %s21, 3
      %p243 = scmp.lt.s32.totalorder %s22, 0
      %s244 = scalar_select %p243, %s22, 0
      %s245 = sadd.s32 %s244, %s242
      %s246 = smul.addr %s240, 4
      %s247 = sadd.s32 %s245, %s246
      %s248 = smul.addr %s247, 4
      %s249 = scalar_lea.vmem %s0, %s248
      %p250 = pneg %p65
      %p251 = pneg %p62
      %p252 = scmp.lt.s32.totalorder %s23, %s22
      %s253 = scalar_select %p252, %s23, %s22
      %p254 = scmp.lt.s32.totalorder %s20, 1
      %s255 = scalar_select %p254, %s20, 1
      %p256 = scmp.lt.s32.totalorder %s21, 3
      %s257 = scalar_select %p256, %s21, 3
      %p258 = scmp.lt.s32.totalorder %s253, 0
      %s259 = scalar_select %p258, %s253, 0
      %s260 = sadd.s32 %s259, %s257
      %s261 = smul.addr %s255, 4
      %s262 = sadd.s32 %s260, %s261
      %s263 = smul.addr %s262, 4
      %s264 = scalar_lea.vmem %s1, %s263
      %p265 = pneg %p99
      %p266 = pneg %p96
      %p267 = scmp.lt.s32.totalorder %s23, %s22
      %s268 = scalar_select %p267, %s23, %s22
      %p269 = scmp.lt.s32.totalorder %s20, 1
      %s270 = scalar_select %p269, %s20, 1
      %p271 = scmp.lt.s32.totalorder %s21, 3
      %s272 = scalar_select %p271, %s21, 3
      %p273 = scmp.lt.s32.totalorder %s268, 0
      %s274 = scalar_select %p273, %s268, 0
      %s275 = sadd.s32 %s274, %s272
      %s276 = smul.addr %s270, 4
      %s277 = sadd.s32 %s275, %s276
      %s278 = smul.addr %s277, 4
      %s279 = scalar_lea.vmem %s2, %s278
      %p280 = pneg %p133
      %p281 = pneg %p130
      %p282 = pneg %p163
      %p283 = pneg %p160
      %p284 = scmp.lt.s32.totalorder %s20, 1
      %s285 = scalar_select %p284, %s20, 1
      %p286 = scmp.lt.s32.totalorder %s21, 3
      %s287 = scalar_select %p286, %s21, 3
      %p288 = scmp.lt.s32.totalorder %s22, 0
      %s289 = scalar_select %p288, %s22, 0
      %s290 = sadd.s32 %s289, %s287
      %s291 = smul.addr %s285, 4
      %s292 = sadd.s32 %s290, %s291
      %s293 = smul.addr %s292, 4
      %s294 = scalar_lea.vmem %s3, %s293
      %p295 = scmp.lt.s32.totalorder %s20, 1
      %s296 = scalar_select %p295, %s20, 1
      %p297 = scmp.lt.s32.totalorder %s21, 3
      %s298 = scalar_select %p297, %s21, 3
      %p299 = scmp.lt.s32.totalorder %s22, 0
      %s300 = scalar_select %p299, %s22, 0
      %s301 = sadd.s32 %s300, %s298
      %s302 = smul.addr %s296, 4
      %s303 = sadd.s32 %s301, %s302
      %s304 = smul.addr %s303, 4
      %s305 = scalar_lea.vmem %s0, %s304
      %p306 = scmp.lt.s32.totalorder %s23, %s22
      %s307 = scalar_select %p306, %s23, %s22
      %p308 = scmp.lt.s32.totalorder %s20, 1
      %s309 = scalar_select %p308, %s20, 1
      %p310 = scmp.lt.s32.totalorder %s21, 3
      %s311 = scalar_select %p310, %s21, 3
      %p312 = scmp.lt.s32.totalorder %s307, 0
      %s313 = scalar_select %p312, %s307, 0
      %s314 = sadd.s32 %s313, %s311
      %s315 = smul.addr %s309, 4
      %s316 = sadd.s32 %s314, %s315
      %s317 = smul.addr %s316, 4
      %s318 = scalar_lea.vmem %s1, %s317
      %p319 = scmp.lt.s32.totalorder %s23, %s22
      %s320 = scalar_select %p319, %s23, %s22
      %p321 = scmp.lt.s32.totalorder %s23, %s22
      %s322 = scalar_select %p321, %s23, %s22
      %p323 = scmp.lt.s32.totalorder %s20, 1
      %s324 = scalar_select %p323, %s20, 1
      %p325 = scmp.lt.s32.totalorder %s21, 3
      %s326 = scalar_select %p325, %s21, 3
      %p327 = scmp.lt.s32.totalorder %s322, 0
      %s328 = scalar_select %p327, %s322, 0
      %s329 = sadd.s32 %s328, %s326
      %s330 = smul.addr %s324, 4
      %s331 = sadd.s32 %s329, %s330
      %s332 = smul.addr %s331, 4
      %s333 = scalar_lea.vmem %s2, %s332
      %p334 = scmp.lt.s32.totalorder %s23, %s22
      %s335 = scalar_select %p334, %s23, %s22
      %p336 = scmp.lt.s32.totalorder %s20, 1
      %s337 = scalar_select %p336, %s20, 1
      %p338 = scmp.lt.s32.totalorder %s21, 3
      %s339 = scalar_select %p338, %s21, 3
      %p340 = scmp.lt.s32.totalorder %s22, 0
      %s341 = scalar_select %p340, %s22, 0
      %s342 = sadd.s32 %s341, %s339
      %s343 = smul.addr %s337, 4
      %s344 = sadd.s32 %s342, %s343
      %s345 = smul.addr %s344, 4
      %s346 = scalar_lea.vmem %s3, %s345
      %p348 = scmp.eq.s32.totalorder %s23, 0
      // Predicated region
      $region33: #{flash_attention_with_rotary_forward.4} parent=31 // pred_check
        %p349 = pneg %p348
      $region34: #{flash_attention_with_rotary_forward.4} parent=31 // pred_check_branch
        %351 = sbr.rel (%p349) target = $region36
      $region35: #{flash_attention_with_rotary_forward.4} parent=31 // pred_region
        %v352 = vld [vmem:[%s305] sm:$0xf]
        %v353 = vunpack.c.l.bf16 %v352
        %v354 = vmul.f32 %v353, 0.35355338
        %v355 = vpack.c.bf16 %v354, %v354
        %vm356 = vcmask 60416
        %357 = vst.msk [vmem:[#allocation2] sm:$0xf] %vm356, %v355
        %vm358 = vcmask 7168
        %359 = vst.msk [vmem:[#allocation3] sm:$0xff] %vm358, -inf
        %360 = vst.msk [vmem:[#allocation4] sm:$0xff] %vm358, 0.0
        %vm361 = vcmask 64512
        %362 = vst.msk [vmem:[#allocation5] sm:$0xff] %vm361, 0.0
      $region36: #{flash_attention_with_rotary_forward.4} parent=31 // pred_fallthru
        _
      %s363 = smul.u32 %s22, 8
      %s364 = smul.u32 %s23, 8
      %s365 = sadd.s32 %s363, 7
      %s366 = sadd.s32 %s364, 7
      %p367 = scmp.le.s32.totalorder %s366, %s363
      %p368 = scmp.le.s32.totalorder %s364, %s365
      %p369 = scmp.gt.s32.totalorder %s366, %s363
      %p370 = pnand %p368, %p369
      %p371 = pneg %p370
      // Predicated region
      $region37: #{flash_attention_with_rotary_forward.4} parent=31 // pred_check
        %p372 = pneg %p367
      $region38: #{flash_attention_with_rotary_forward.4} parent=31 // pred_check_branch
        %374 = sbr.rel (%p372) target = $region40
      $region39: #{flash_attention_with_rotary_forward.4} parent=31 // pred_region
        %v375 = vld [vmem:[#allocation2] sm:$0xf]
        %v376 = vld [vmem:[%s318] sm:$0xf]
        %v377 = vld [vmem:[%s333] sm:$0xf]
        %vm378 = vcmask 64512
        %v380 = vsel %vm378, %v375, 0
        %v383 = vsel %vm378, %v376, 0
        %385 = vmatpush.bf16.xpose.msra.mxu0 0
        %386 = vmatpush.bf16.xpose.msra.mxu0 0
        %387 = vmatpush.bf16.xpose.msra.mxu0 0
        %388 = vmatpush.bf16.xpose.msra.mxu0 0
        %389 = vmatpush.bf16.xpose.msra.mxu0 0
        %390 = vmatpush.bf16.xpose.msra.mxu0 0
        %391 = vmatpush.bf16.xpose.msra.mxu0 0
        %392 = vmatpush.bf16.xpose.msra.mxu0 %v383
        %393 = vmatmul.bf16.gmra.mxu0 %v380
        %v394 = vpop.f32.mrf.mxu0
        %v395 = vadd.f32 0.0, %v394
        %v396 = vpop.f32.mrf.mxu0
        %397 = vdwg.mxu0
        %v398 = vld [vmem:[#allocation3] sm:$0xff]
        %v399 = vsel %vm378, %v395, -inf
        %400 = vmax.xlane.f32.xlu0 %v399
        %v401 = vpop.xlane.xlu0 %400
        %v402 = vmax.f32 %v398, %v401
        %v403 = vsub.f32 %v398, %v402
        %v404 = vmul.f32 %v403, 1.442695
        %v405 = vpow.pop %v404
        %407 = vset.pattern.permute.xlu0 0
        %408 = vperm.xlu0 %407, %v402
        %v409 = vpop.permute.xlu0 %408
        %v411 = vsub.f32 %v395, %v409
        %v412 = vmul.f32 %v411, 1.442695
        %v413 = vpow.pop %v412
        %v414 = vld [vmem:[#allocation4] sm:$0xff]
        %v415 = vmul.f32 %v405, %v414
        %v416 = vsel %vm378, %v413, 0.0
        %417 = vadd.xlane.f32.xlu0 %v416
        %v418 = vpop.xlane.xlu0 %417
        %v419 = vadd.f32 %v415, %v418
        %vm420 = vcmask 7168
        %421 = vst.msk [vmem:[#allocation4] sm:$0xff] %vm420, %v419
        %v422 = vld [vmem:[#allocation5] sm:$0xff]
        %424 = vset.pattern.permute.xlu0 0
        %425 = vperm.xlu0 %424, %v405
        %v426 = vpop.permute.xlu0 %425
        %v428 = vmul.f32 %v426, %v422
        %v429 = vpack.c.bf16 %v413, %v413
        %v431 = vsel %vm378, %v429, 0
        %vm433 = vcmask 1043456
        %v435 = vsel %vm433, %v377, 0
        %437 = vmatpush.bf16.msra.mxu0 0
        %438 = vmatpush.bf16.msra.mxu0 0
        %439 = vmatpush.bf16.msra.mxu0 0
        %440 = vmatpush.bf16.msra.mxu0 0
        %441 = vmatpush.bf16.msra.mxu0 0
        %442 = vmatpush.bf16.msra.mxu0 0
        %443 = vmatpush.bf16.msra.mxu0 0
        %444 = vmatpush.bf16.msra.mxu0 %v435
        %445 = vmatmul.bf16.gmra.mxu0 %v431
        %v446 = vpop.f32.mrf.mxu0
        %v447 = vadd.f32 0.0, %v446
        %v448 = vpop.f32.mrf.mxu0
        %449 = vdwg.mxu0
        %v450 = vadd.f32 %v428, %v447
        %451 = vst.msk [vmem:[#allocation5] sm:$0xff] %vm378, %v450
        %452 = vst.msk [vmem:[#allocation3] sm:$0xff] %vm420, %v402
      $region40: #{flash_attention_with_rotary_forward.4} parent=31 // pred_fallthru
        _
      // Predicated region
      $region41: #{flash_attention_with_rotary_forward.4} parent=31 // pred_check
        _
      $region42: #{flash_attention_with_rotary_forward.4} parent=31 // pred_check_branch
        %454 = sbr.rel (%p370) target = $region44
      $region43: #{flash_attention_with_rotary_forward.4} parent=31 // pred_region
        %v455 = vld [vmem:[#allocation2] sm:$0xf]
        %v456 = vld [vmem:[%s318] sm:$0xf]
        %v457 = vld [vmem:[%s333] sm:$0xf]
        %vm458 = vcmask 64512
        %v460 = vsel %vm458, %v455, 0
        %v463 = vsel %vm458, %v456, 0
        %465 = vmatpush.bf16.xpose.msra.mxu0 0
        %466 = vmatpush.bf16.xpose.msra.mxu0 0
        %467 = vmatpush.bf16.xpose.msra.mxu0 0
        %468 = vmatpush.bf16.xpose.msra.mxu0 0
        %469 = vmatpush.bf16.xpose.msra.mxu0 0
        %470 = vmatpush.bf16.xpose.msra.mxu0 0
        %471 = vmatpush.bf16.xpose.msra.mxu0 0
        %472 = vmatpush.bf16.xpose.msra.mxu0 %v463
        %473 = vmatmul.bf16.gmra.mxu0 %v460
        %v474 = vpop.f32.mrf.mxu0
        %v475 = vadd.f32 0.0, %v474
        %v476 = vpop.f32.mrf.mxu0
        %477 = vdwg.mxu0
        %v478 = vlaneseq
        %v479 = vshrl.u32 %v478, 7
        %v480 = vstv %s363
        %v481 = vadd.s32 %v480, %v479
        %v482 = vlaneseq
        %v483 = vand.u32 %v482, 127
        %v484 = vstv %s364
        %v485 = vadd.s32 %v484, %v483
        %vm486 = vcmp.le.s32.totalorder %v485, %v481
        %v487 = vsel %vm486, %v475, -1e+30
        %v488 = vld [vmem:[#allocation3] sm:$0xff]
        %v489 = vsel %vm458, %v487, -inf
        %490 = vmax.xlane.f32.xlu0 %v489
        %v491 = vpop.xlane.xlu0 %490
        %v492 = vmax.f32 %v488, %v491
        %v493 = vsub.f32 %v488, %v492
        %v494 = vmul.f32 %v493, 1.442695
        %v495 = vpow.pop %v494
        %497 = vset.pattern.permute.xlu0 0
        %498 = vperm.xlu0 %497, %v492
        %v499 = vpop.permute.xlu0 %498
        %v501 = vsub.f32 %v487, %v499
        %v502 = vmul.f32 %v501, 1.442695
        %v503 = vpow.pop %v502
        %v504 = vld [vmem:[#allocation4] sm:$0xff]
        %v505 = vmul.f32 %v495, %v504
        %v506 = vsel %vm458, %v503, 0.0
        %507 = vadd.xlane.f32.xlu0 %v506
        %v508 = vpop.xlane.xlu0 %507
        %v509 = vadd.f32 %v505, %v508
        %vm510 = vcmask 7168
        %511 = vst.msk [vmem:[#allocation4] sm:$0xff] %vm510, %v509
        %v512 = vld [vmem:[#allocation5] sm:$0xff]
        %514 = vset.pattern.permute.xlu0 0
        %515 = vperm.xlu0 %514, %v495
        %v516 = vpop.permute.xlu0 %515
        %v518 = vmul.f32 %v516, %v512
        %v519 = vpack.c.bf16 %v503, %v503
        %v521 = vsel %vm458, %v519, 0
        %vm523 = vcmask 1043456
        %v525 = vsel %vm523, %v457, 0
        %527 = vmatpush.bf16.msra.mxu0 0
        %528 = vmatpush.bf16.msra.mxu0 0
        %529 = vmatpush.bf16.msra.mxu0 0
        %530 = vmatpush.bf16.msra.mxu0 0
        %531 = vmatpush.bf16.msra.mxu0 0
        %532 = vmatpush.bf16.msra.mxu0 0
        %533 = vmatpush.bf16.msra.mxu0 0
        %534 = vmatpush.bf16.msra.mxu0 %v525
        %535 = vmatmul.bf16.gmra.mxu0 %v521
        %v536 = vpop.f32.mrf.mxu0
        %v537 = vadd.f32 0.0, %v536
        %v538 = vpop.f32.mrf.mxu0
        %539 = vdwg.mxu0
        %v540 = vadd.f32 %v518, %v537
        %541 = vst.msk [vmem:[#allocation5] sm:$0xff] %vm458, %v540
        %542 = vst.msk [vmem:[#allocation3] sm:$0xff] %vm510, %v492
      $region44: #{flash_attention_with_rotary_forward.4} parent=31 // pred_fallthru
        _
      // Predicated region
      $region45: #{flash_attention_with_rotary_forward.4} parent=31 // pred_check
        %p543 = pneg %p348
      $region46: #{flash_attention_with_rotary_forward.4} parent=31 // pred_check_branch
        %545 = sbr.rel (%p543) target = $region48
      $region47: #{flash_attention_with_rotary_forward.4} parent=31 // pred_region
        %v546 = vld [vmem:[#allocation5] sm:$0xff]
        %v547 = vld [vmem:[#allocation4] sm:$0xff]
        %v548 = vrcp.pop %v547
        %550 = vset.pattern.permute.xlu0 0
        %551 = vperm.xlu0 %550, %v548
        %v552 = vpop.permute.xlu0 %551
        %v554 = vmul.f32 %v546, %v552
        %v555 = vpack.c.bf16 %v554, %v554
        %vm556 = vcmask 60416
        %557 = vst.msk [vmem:[%s346] sm:$0xf] %vm556, %v555
      $region48: #{flash_attention_with_rotary_forward.4} parent=31 // pred_fallthru
        _
      %p558 = scmp.lt.s32.totalorder %s20, 1
      %s559 = scalar_select %p558, %s20, 1
      %p560 = scmp.lt.s32.totalorder %s21, 3
      %s561 = scalar_select %p560, %s21, 3
      %p562 = scmp.lt.s32.totalorder %s22, 0
      %s563 = scalar_select %p562, %s22, 0
      %s564 = sadd.s32 %s563, %s561
      %s565 = smul.addr %s559, 4
      %s566 = sadd.s32 %s564, %s565
      %s567 = smul.addr %s566, 4
      %s568 = scalar_lea.vmem %s3, %s567
      // Predicated region
      $region49: #{flash_attention_with_rotary_forward.4} parent=31 // pred_check
        %p569 = pneg %p160
      $region50: #{flash_attention_with_rotary_forward.4} parent=31 // pred_check_branch
        %571 = sbr.rel (%p569) target = $region52
      $region51: #{flash_attention_with_rotary_forward.4} parent=31 // pred_region
        _
      $region52: #{flash_attention_with_rotary_forward.4} parent=31 // pred_fallthru
        _
    $region32: #{flash_attention_with_rotary_forward.4} parent=5 // pred_fallthru
      _
    %p572 = scmp.le.s32.totalorder 2, %s9
    // Predicated region
    $region53: #{flash_attention_with_rotary_forward.4} parent=5 // pred_check
      %p573 = pneg %p572
    $region54: #{flash_attention_with_rotary_forward.4} parent=5 // pred_check_branch
      %575 = sbr.rel (%p573) target = $region56
    $region55: #{flash_attention_with_rotary_forward.4} parent=5 // pred_region
      %s576 = ssub.s32 %s9, 2
      // Predicated region
      $region57: #{flash_attention_with_rotary_forward.4} parent=55 // pred_check
        %p577 = pneg %p166
      $region58: #{flash_attention_with_rotary_forward.4} parent=55 // pred_check_branch
        %579 = sbr.rel (%p577) target = $region60
      $region59: #{flash_attention_with_rotary_forward.4} parent=55 // pred_region
        %p580 = scmp.lt.s32.totalorder %s24, 1
        %s581 = scalar_select %p580, %s24, 1
        %p582 = scmp.lt.s32.totalorder %s25, 3
        %s583 = scalar_select %p582, %s25, 3
        %p584 = scmp.lt.s32.totalorder %s26, 0
        %s585 = scalar_select %p584, %s26, 0
        %s586 = sadd.s32 %s585, %s583
        %s587 = smul.addr %s581, 4
        %s588 = sadd.s32 %s586, %s587
        %s589 = smul.addr %s588, 4
        %s590 = scalar_lea.vmem %s3, %s589
      $region60: #{flash_attention_with_rotary_forward.4} parent=55 // pred_fallthru
        _
    $region56: #{flash_attention_with_rotary_forward.4} parent=5 // pred_fallthru
      _
  $region6: #{flash_attention_with_rotary_forward.4} parent=0 // loop_footer
    %s13 = sadd.s32 1, %s9
  $region7: #{flash_attention_with_rotary_forward.4} parent=0 // loop_footer_branch
    %8 = sbr.rel target = $region3
  $region8: #{flash_attention_with_rotary_forward.4} parent=0 // loop_exit
    _

</llo_original>
